<compile_context>
chip_gen: v7x
topology: tpu7x:2x2x1
jax: 0.10.0
libtpu: 0.0.40
codegen_flags: <defaults>
</compile_context>

<pallas_src>
import math
import functools

import numpy as np
import jax
import jax.numpy as jnp
from jax import lax
from jax.experimental import pallas as pl
from jax.experimental.pallas import tpu as pltpu


# ---------------------------------------------------------------------------
# Pallas kernels
# ---------------------------------------------------------------------------
def _linear_kernel(x_ref, w_ref, b_ref, o_ref):
    x = x_ref[...].astype(jnp.bfloat16)
    w = w_ref[...].astype(jnp.bfloat16)
    o_ref[...] = jnp.dot(x, w, preferred_element_type=jnp.float32) + b_ref[...]


def linear(x, w, b, row_tile=256):
    """y = x @ w + b, row-tiled ("parallel") with bf16 MXU inputs."""
    n, k = x.shape
    d = w.shape[1]
    tile = min(row_tile, n)
    return pl.pallas_call(
        _linear_kernel,
        out_shape=jax.ShapeDtypeStruct((n, d), jnp.float32),
        grid=(pl.cdiv(n, tile),),
        in_specs=[
            pl.BlockSpec((tile, k), lambda i: (i, 0)),
            pl.BlockSpec((k, d), lambda i: (0, 0)),
            pl.BlockSpec((1, d), lambda i: (0, 0)),
        ],
        out_specs=pl.BlockSpec((tile, d), lambda i: (i, 0)),
        compiler_params=pltpu.CompilerParams(dimension_semantics=("parallel",)),
    )(x, w, b.reshape(1, d))


def _hgt_dst_kernel(alpha_ref, kv_ref, q_ref, mask_ref, hprev_ref,
                    aw_ref, ab_ref, g_ref, bln_ref, o_ref, agg_ref,
                    *, n_heads, d_k, out_dim, use_norm, eps=1e-5):
    """One destination tile x one incoming edge type.

    Grid = (dst_tiles ["parallel"], n_edge_types ["arbitrary"]).
    agg_ref (VMEM scratch) accumulates messages across edge types
    (cross_reducer='sum'); the a_linear + skip + LayerNorm epilogue runs under
    pl.when on the last edge-type step with a single dense o_ref store.
    """
    e = pl.program_id(1)
    n_e = pl.num_programs(1)

    @pl.when(e == 0)
    def _init():
        agg_ref[...] = jnp.zeros_like(agg_ref)

    # kv_rel already has relation_att (pri/sqrt(d_k)-scaled) / relation_msg
    # folded in by the hoisted projection -- nothing to transform here.
    kv = kv_ref[0]                                      # [Ns, 2*out] f32
    k_b = kv[:, :out_dim].astype(jnp.bfloat16)
    v_b = kv[:, out_dim:].astype(jnp.bfloat16)
    q_b = q_ref[...].astype(jnp.bfloat16)               # [Td, out]

    # mask handling hoisted out of the head loop (int8 -> bool once)
    valid = mask_ref[0] > 0                              # [Td, Ns] bool
    neg_bias = jnp.where(valid, 0.0, -1e30).astype(jnp.float32)
    maskf = valid.astype(jnp.float32)

    for h in range(n_heads):
        sl = slice(h * d_k, (h + 1) * d_k)
        # per-head scores: bf16 MXU inputs, f32 accumulation, no transpose
        s = lax.dot_general(q_b[:, sl], k_b[:, sl],
                            (((1,), (1,)), ((), ())),
                            preferred_element_type=jnp.float32)     # [Td, Ns]
        s = s + neg_bias
        # edge_softmax normalized by destination (masked softmax over sources)
        m = jnp.max(s, axis=-1, keepdims=True)
        p = jnp.exp(s - m) * maskf
        denom = jnp.sum(p, axis=-1, keepdims=True)
        denom = jnp.where(denom > 0.0, denom, 1.0)       # zero in-degree -> 0
        attn = p * pl.reciprocal(denom, approx=True)     # EUP slot
        # narrow per-head PV dot accumulated into the VMEM scratch
        head_msg = jnp.dot(attn.astype(jnp.bfloat16), v_b[:, sl],
                           preferred_element_type=jnp.float32)      # [Td, d_k]
        agg_ref[:, sl] = agg_ref[:, sl] + head_msg

    @pl.when(e == n_e - 1)
    def _epilogue():
        # fused out-transform: a_linear + sigmoid-skip + LayerNorm
        alpha = alpha_ref[0]
        t = agg_ref[...]
        trans = (jnp.dot(t.astype(jnp.bfloat16),
                         aw_ref[...].astype(jnp.bfloat16),
                         preferred_element_type=jnp.float32) + ab_ref[...])
        out = trans * alpha + hprev_ref[...] * (1.0 - alpha)
        if use_norm:
            mean = jnp.mean(out, axis=-1, keepdims=True)
            var = jnp.mean((out - mean) ** 2, axis=-1, keepdims=True)
            out = (out - mean) * lax.rsqrt(var + eps) * g_ref[...] + bln_ref[...]
        o_ref[...] = out                                  # single dense store


def hgt_dst_attention(kv_stack, q_dst, mask_stack, h_prev,
                      a_w, a_b, alpha, gamma, beta,
                      *, n_heads, d_k, out_dim, use_norm, dst_tile=256):
    """Merged attention over all edge types feeding one destination node type."""
    n_etypes, ns, _ = kv_stack.shape
    nd = q_dst.shape[0]
    tile = min(dst_tile, nd)
    kernel = functools.partial(_hgt_dst_kernel, n_heads=n_heads, d_k=d_k,
                               out_dim=out_dim, use_norm=use_norm)
    return pl.pallas_call(
        kernel,
        out_shape=jax.ShapeDtypeStruct((nd, out_dim), jnp.float32),
        grid=(pl.cdiv(nd, tile), n_etypes),
        in_specs=[
            pl.BlockSpec(memory_space=pltpu.MemorySpace.SMEM),            # alpha
            pl.BlockSpec((1, ns, 2 * out_dim), lambda i, e: (e, 0, 0)),   # kv_rel
            pl.BlockSpec((tile, out_dim), lambda i, e: (i, 0)),           # q_dst
            pl.BlockSpec((1, tile, ns), lambda i, e: (e, i, 0)),          # mask i8
            pl.BlockSpec((tile, out_dim), lambda i, e: (i, 0)),           # h_prev
            pl.BlockSpec((out_dim, out_dim), lambda i, e: (0, 0)),        # a_w
            pl.BlockSpec((1, out_dim), lambda i, e: (0, 0)),              # a_b
            pl.BlockSpec((1, out_dim), lambda i, e: (0, 0)),              # ln gamma
            pl.BlockSpec((1, out_dim), lambda i, e: (0, 0)),              # ln beta
        ],
        out_specs=pl.BlockSpec((tile, out_dim), lambda i, e: (i, 0)),
        scratch_shapes=[pltpu.VMEM((tile, out_dim), jnp.float32)],
        compiler_params=pltpu.CompilerParams(
            dimension_semantics=("parallel", "arbitrary")),
    )(alpha, kv_stack, q_dst, mask_stack, h_prev,
      a_w, a_b.reshape(1, -1), gamma.reshape(1, -1), beta.reshape(1, -1))


# ---------------------------------------------------------------------------
# Parameter initialization + relation-weight folding (deterministic, in-script)
# ---------------------------------------------------------------------------
def _block_diag_heads(rel):
    # rel: [B, d_k, d_k] -> block-diagonal [B*d_k, B*d_k]
    b, dk, _ = rel.shape
    eye = jnp.eye(b, dtype=rel.dtype)
    return jnp.einsum('hij,hg->higj', rel, eye).reshape(b * dk, b * dk)


def init_linear(key, in_dim, out_dim):
    k1, k2 = jax.random.split(key)
    bound = 1.0 / math.sqrt(in_dim)
    w = jax.random.uniform(k1, (in_dim, out_dim), jnp.float32, -bound, bound)
    b = jax.random.uniform(k2, (out_dim,), jnp.float32, -bound, bound)
    return w, b


def init_hgt_layer(key, in_dim, out_dim, num_types, num_rels, n_heads):
    d_k = out_dim // n_heads
    keys = jax.random.split(key, 4 * num_types + 2)
    ki = iter(keys)
    p = {'out_dim': out_dim, 'n_heads': n_heads,
         'kv_w': [], 'kv_b': [], 'q_w': [], 'q_b': [], 'a_w': [], 'a_b': []}
    for _ in range(num_types):
        kw, kb = init_linear(next(ki), in_dim, out_dim)
        qw, qb = init_linear(next(ki), in_dim, out_dim)
        vw, vb = init_linear(next(ki), in_dim, out_dim)
        aw, ab = init_linear(next(ki), out_dim, out_dim)
        p['kv_w'].append(jnp.concatenate([kw, vw], axis=1))   # fused K|V weights
        p['kv_b'].append(jnp.concatenate([kb, vb], axis=0))
        p['q_w'].append(qw); p['q_b'].append(qb)
        p['a_w'].append(aw); p['a_b'].append(ab)
    xav = math.sqrt(6.0 / (d_k + d_k))
    p['rel_att'] = jax.random.uniform(next(ki), (num_rels, n_heads, d_k, d_k),
                                      jnp.float32, -xav, xav)
    p['rel_msg'] = jax.random.uniform(next(ki), (num_rels, n_heads, d_k, d_k),
                                      jnp.float32, -xav, xav)
    p['rel_pri'] = jnp.ones((num_rels, n_heads), jnp.float32)
    p['skip'] = jnp.ones((num_types,), jnp.float32)
    p['ln_g'] = [jnp.ones((out_dim,), jnp.float32) for _ in range(num_types)]
    p['ln_b'] = [jnp.zeros((out_dim,), jnp.float32) for _ in range(num_types)]
    return p


def fold_relation_params(p, canonical_etypes, node_dict, edge_dict):
    """Fold relation_att (with pri/sqrt(d_k)) and relation_msg into the K|V
    projection weights, per (src node type, edge type) pair.

    NOTE: valid for inference; if parameters are trained, re-run after each
    parameter update (cheap)."""
    out_dim = p['out_dim']
    n_heads = p['n_heads']
    d_k = out_dim // n_heads
    sqrt_dk = math.sqrt(d_k)
    kve = {}
    for (src, et, _dst) in canonical_etypes:
        nid = node_dict[src]
        eid = edge_dict[et]
        scale = (p['rel_pri'][eid] / sqrt_dk)[:, None, None]
        blocks = jnp.concatenate([p['rel_att'][eid] * scale, p['rel_msg'][eid]],
                                 axis=0)
        bd = _block_diag_heads(blocks)                    # [2*out, 2*out]
        kve[(src, et)] = (jnp.dot(p['kv_w'][nid], bd),    # [in, 2*out]
                          jnp.dot(p['kv_b'][nid], bd))    # [2*out]
    return kve


def init_hgt(key, node_feat_dims, embed, hidden, out, n_hidden_layers,
             n_heads, num_types, num_rels):
    keys = jax.random.split(key, num_types + n_hidden_layers + 2)
    embed_w, embed_b = [], []
    for i in range(num_types):
        w, b = init_linear(keys[i], node_feat_dims[i], embed)
        embed_w.append(w); embed_b.append(b)
    dims = [(embed, hidden)] + [(hidden, hidden)] * n_hidden_layers + [(hidden, out)]
    layers = [init_hgt_layer(keys[num_types + j], di, do, num_types, num_rels,
                             n_heads)
              for j, (di, do) in enumerate(dims)]
    return {'embed_w': embed_w, 'embed_b': embed_b, 'layers': layers}


# ---------------------------------------------------------------------------
# Forward pass (glue in JAX; hot path in Pallas kernels above)
# ---------------------------------------------------------------------------
def hgt_layer_forward(p, h, graph, node_dict, edge_dict, n_heads, use_norm):
    out_dim = p['out_dim']
    d_k = out_dim // n_heads

    # hoisted Q projection: one matmul per node type per layer
    q = {nt: linear(h[nt], p['q_w'][nid], p['q_b'][nid])
         for nt, nid in node_dict.items()}
    # hoisted K|V projection with relation transform pre-folded into weights:
    # one matmul per (src-type, edge-type) pair, done OUTSIDE the attention
    # kernel (no per-dst-tile recomputation).
    kv_rel = {key: linear(h[key[0]], w, b) for key, (w, b) in p['kve'].items()}

    # group incoming canonical edge types per destination node type
    incoming = {nt: [] for nt in node_dict}
    for (src, et, dst) in graph['canonical_etypes']:
        incoming[dst].append((src, et))

    new_h = {}
    for nt, nid in node_dict.items():
        nd = graph['num_nodes'][nt]
        alpha = jax.nn.sigmoid(p['skip'][nid]).reshape(1)
        edges = incoming[nt]
        if edges:
            ns_max = max(kv_rel[key].shape[0] for key in edges)
            kv_stack = jnp.stack(
                [jnp.pad(kv_rel[key], ((0, ns_max - kv_rel[key].shape[0]), (0, 0)))
                 for key in edges])
            mask_stack = jnp.stack(
                [jnp.pad(graph['masks'][et],
                         ((0, 0), (0, ns_max - graph['masks'][et].shape[1])))
                 for (_, et) in edges]).astype(jnp.int8)
        else:
            # TODO(synk): node type with no incoming edges -> zero message.
            ns_max = 8
            kv_stack = jnp.zeros((1, ns_max, 2 * out_dim), jnp.float32)
            mask_stack = jnp.zeros((1, nd, ns_max), jnp.int8)
        new_h[nt] = hgt_dst_attention(
            kv_stack, q[nt], mask_stack, h[nt],
            p['a_w'][nid], p['a_b'][nid], alpha,
            p['ln_g'][nid], p['ln_b'][nid],
            n_heads=n_heads, d_k=d_k, out_dim=out_dim, use_norm=use_norm)
    return new_h


def hgt_forward(model_params, graph, node_feats, node_dict, edge_dict,
                n_heads, layer_norm):
    # HeteroLinear embedding (node_tids == identity)
    h = {nt: linear(node_feats[nt],
                    model_params['embed_w'][node_dict[nt]],
                    model_params['embed_b'][node_dict[nt]])
         for nt in node_dict}
    for layer_params in model_params['layers']:
        h = hgt_layer_forward(layer_params, h, graph, node_dict, edge_dict,
                              n_heads, layer_norm)
    return h


def make_mask(nd, ns, seed):
    d = np.arange(nd)[:, None]
    u = np.arange(ns)[None, :]
    m = ((d * 3 + u * 5 + seed) % 7 < 3).astype(np.int8)
    m[np.arange(nd), np.arange(nd) % ns] = 1   # every dst has >= 1 in-edge
    return jnp.asarray(m)


# ---------------------------------------------------------------------------
if __name__ == "__main__":
    key = jax.random.PRNGKey(0)

    # heterogeneous graph: 2 node types, 3 canonical edge types
    node_dict = {'user': 0, 'item': 1}
    edge_dict = {'follows': 0, 'buys': 1, 'bought-by': 2}
    canonical = [('user', 'follows', 'user'),
                 ('user', 'buys', 'item'),
                 ('item', 'bought-by', 'user')]
    num_nodes = {'user': 8, 'item': 8}
    node_feat_dims = {'user': 12, 'item': 10}

    embed_size = hidden_size = out_size = 32
    n_heads = 4
    num_hidden_layers = 1
    layer_norm = True

    masks = {
        'follows':   make_mask(num_nodes['user'], num_nodes['user'], 0),
        'buys':      make_mask(num_nodes['item'], num_nodes['user'], 1),
        'bought-by': make_mask(num_nodes['user'], num_nodes['item'], 2),
    }
    graph = {'num_nodes': num_nodes, 'canonical_etypes': canonical, 'masks': masks}

    kf, kp = jax.random.split(key)
    fkeys = jax.random.split(kf, len(node_dict))
    node_feats = {nt: jax.random.normal(
                      fkeys[i], (num_nodes[nt], node_feat_dims[nt]), jnp.float32)
                  for i, nt in enumerate(node_dict)}

    params = init_hgt(kp,
                      [node_feat_dims[nt] for nt in node_dict],
                      embed_size, hidden_size, out_size,
                      num_hidden_layers, n_heads,
                      len(node_dict), len(edge_dict))
    # one-time fold of relation transforms into projection weights (inference)
    for lp in params['layers']:
        lp['kve'] = fold_relation_params(lp, canonical, node_dict, edge_dict)

    h_out = hgt_forward(params, graph, node_feats, node_dict, edge_dict,
                        n_heads, layer_norm)

    for nt in h_out:
        jax.block_until_ready(h_out[nt])
        assert h_out[nt].shape == (num_nodes[nt], out_size)
        assert bool(jnp.all(jnp.isfinite(h_out[nt])))

    print("KERNEL_OK")
</pallas_src>

<mosaic_0001>
module attributes {stable_mosaic.version = 11 : i64} {
  func.func @_linear_kernel(%arg0: i32, %arg1: memref<8x12xf32, #tpu.memory_space<vmem>>, %arg2: memref<12x32xf32, #tpu.memory_space<vmem>>, %arg3: memref<1x32xf32, #tpu.memory_space<vmem>>, %arg4: memref<8x32xf32, #tpu.memory_space<vmem>>) attributes {dimension_semantics = [#tpu.dimension_semantics<parallel>], iteration_bounds = array<i64: 1>, scalar_prefetch = 0 : i64, scratch_operands = 0 : i64, tpu.core_type = #tpu.core_type<tc>, window_params = [{transform_indices = @transform_0, window_bounds = array<i64: 8, 12>}, {pipeline_mode = #tpu.pipeline_mode<synchronous>, transform_indices = @transform_1, window_bounds = array<i64: 12, 32>}, {pipeline_mode = #tpu.pipeline_mode<synchronous>, transform_indices = @transform_2, window_bounds = array<i64: 1, 32>}, {transform_indices = @transform_3, window_bounds = array<i64: 8, 32>}]} {
    %c0 = arith.constant 0 : index
    %c0_0 = arith.constant 0 : index
    %0 = vector.load %arg1[%c0, %c0_0] : memref<8x12xf32, #tpu.memory_space<vmem>>, vector<8x12xf32>
    %1 = arith.truncf %0 : vector<8x12xf32> to vector<8x12xbf16>
    %c0_1 = arith.constant 0 : index
    %c0_2 = arith.constant 0 : index
    %2 = vector.load %arg2[%c0_1, %c0_2] : memref<12x32xf32, #tpu.memory_space<vmem>>, vector<12x32xf32>
    %3 = arith.truncf %2 : vector<12x32xf32> to vector<12x32xbf16>
    %cst = arith.constant dense<0.000000e+00> : vector<8x32xf32>
    %4 = tpu.matmul %1, %3, %cst {dimension_numbers = #tpu.dot_dimension_numbers<[1], [0], [0], [1], [0, 0, 1, 1], [], []>} : vector<8x12xbf16>, vector<12x32xbf16>, vector<8x32xf32> -> vector<8x32xf32>
    %c0_3 = arith.constant 0 : index
    %c0_4 = arith.constant 0 : index
    %5 = vector.load %arg3[%c0_3, %c0_4] : memref<1x32xf32, #tpu.memory_space<vmem>>, vector<1x32xf32>
    %6 = vector.broadcast %5 : vector<1x32xf32> to vector<8x32xf32>
    %7 = arith.addf %4, %6 : vector<8x32xf32>
    %c0_5 = arith.constant 0 : index
    %c0_6 = arith.constant 0 : index
    %8 = vector.load %arg4[%c0_5, %c0_6] : memref<8x32xf32, #tpu.memory_space<vmem>>, vector<8x32xf32>
    tpu.vector_store %arg4[%c0_5, %c0_6], %7 {strides = array<i32>} : memref<8x32xf32, #tpu.memory_space<vmem>>, vector<8x32xf32>,
    return
  }
  func.func @transform_0(%arg0: i32) -> (i32, i32) {
    %c0_i32 = arith.constant 0 : i32
    %c0_i32_0 = arith.constant 0 : i32
    return %arg0, %c0_i32 : i32, i32
  }
  func.func @transform_1(%arg0: i32) -> (i32, i32) {
    %c0_i32 = arith.constant 0 : i32
    %c0_i32_0 = arith.constant 0 : i32
    %c0_i32_1 = arith.constant 0 : i32
    return %c0_i32, %c0_i32_0 : i32, i32
  }
  func.func @transform_2(%arg0: i32) -> (i32, i32) {
    %c0_i32 = arith.constant 0 : i32
    %c0_i32_0 = arith.constant 0 : i32
    %c0_i32_1 = arith.constant 0 : i32
    return %c0_i32, %c0_i32_0 : i32, i32
  }
  func.func @transform_3(%arg0: i32) -> (i32, i32) {
    %c0_i32 = arith.constant 0 : i32
    %c0_i32_0 = arith.constant 0 : i32
    return %arg0, %c0_i32 : i32, i32
  }
}

</mosaic_0001>

<llo_original>
// kernel: tpu_custom_call.1
$region0: #{tpu_custom_call.1}
  #allocation0 [shape = 'u32[]', space=smem, size = 0x4, offset = 0x4, fixed_abs, tag = 'smem constant byte address 0x4 - core index']
  #allocation1 [shape = 'u32[144,128]{1,0:T(1,128)}', space=vmem, size = 0x12000, scoped, tag = 'internal scratch']
  %s0 = inlined_call_operand.hbm [shape: f32[8,12], index: 0, kind: input, shape index: {}]
  %s1 = inlined_call_operand.hbm [shape: f32[12,32], index: 1, kind: input, shape index: {}]
  %s2 = inlined_call_operand.vmem [shape: f32[1,32], index: 2, kind: input, shape index: {}]
  %s3 = inlined_call_operand.hbm [shape: f32[8,32], index: 3, kind: output, shape index: {}]
  %s4 = sld [smem:[#allocation0]]
  $region30: #{tpu_custom_call.1} parent=0
    _
  %s6 = ssub.s32 1, %s4
  %s7 = scalar_select 0, %s6, %s4
  $region1: #{tpu_custom_call.1} parent=0
    #allocation2 [shape = 'u8[4096]{0}', space=vmem, size = 0x1000, scoped, tag = 'input window, operand 0, single buffered']
    #allocation3 [shape = 's32[1]{0}', space=sflag, size = 0x4, scoped, tag = 'scoped memory for tpu_custom_call.1']
    #allocation4 [shape = 's32[1]{0}', space=sflag, size = 0x4, scoped, tag = 'scoped memory for tpu_custom_call.1']
    #allocation5 [shape = 'u8[8192]{0}', space=vmem, size = 0x2000, scoped, tag = 'input window, operand 1, single buffered']
    #allocation6 [shape = 's32[1]{0}', space=sflag, size = 0x4, scoped, tag = 'scoped memory for tpu_custom_call.1']
    #allocation7 [shape = 'u8[4096]{0}', space=vmem, size = 0x1000, scoped, tag = 'output window, operand 0, single buffered']
    %8 = vsyncpa [#allocation3], 0
    %9 = vsyncpa [#allocation6], 0
    %10 = vsyncpa [#allocation4], 0
    // Predicated region
    $region2: #{tpu_custom_call.1} parent=1 // pred_check
      _
    $region3: #{tpu_custom_call.1} parent=1 // pred_check_branch
      %12 = sbr.rel (0) target = $region5
    $region4: #{tpu_custom_call.1} parent=1 // pred_region
      %s14 = ssub.s32 128, 128
      %15 = vsyncadd [#allocation3], %s14
      %s17 = sshll.u32 [#allocation2], 4
      %s18 = int_to_ptr.vmem [resolvable:$true] %s17
      %20 = dma.hbm_to_vmem [thread:$0]  %s0, 128, %s18, [#allocation3]
    $region5: #{tpu_custom_call.1} parent=1 // pred_fallthru
      _
    // Predicated region
    $region6: #{tpu_custom_call.1} parent=1 // pred_check
      _
    $region7: #{tpu_custom_call.1} parent=1 // pred_check_branch
      %22 = sbr.rel (0) target = $region9
    $region8: #{tpu_custom_call.1} parent=1 // pred_region
      %s24 = ssub.s32 256, 256
      %25 = vsyncadd [#allocation6], %s24
      %s26 = sshll.u32 [#allocation5], 4
      %s27 = int_to_ptr.vmem [resolvable:$true] %s26
      %32 = dma.hbm_to_vmem [thread:$0]  %s1, 256, %s27, [#allocation6], 128, 128, 8
    $region9: #{tpu_custom_call.1} parent=1 // pred_fallthru
      _
    // Predicated region
    $region10: #{tpu_custom_call.1} parent=1 // pred_check
      _
    $region11: #{tpu_custom_call.1} parent=1 // pred_check_branch
      %34 = sbr.rel (0) target = $region13
    $region12: #{tpu_custom_call.1} parent=1 // pred_region
      _
    $region13: #{tpu_custom_call.1} parent=1 // pred_fallthru
      _
    // Predicated region
    $region14: #{tpu_custom_call.1} parent=1 // pred_check
      _
    $region15: #{tpu_custom_call.1} parent=1 // pred_check_branch
      %36 = sbr.rel (0) target = $region17
    $region16: #{tpu_custom_call.1} parent=1 // pred_region
      %37 = dma.done [#allocation3], 128
    $region17: #{tpu_custom_call.1} parent=1 // pred_fallthru
      _
    // Predicated region
    $region18: #{tpu_custom_call.1} parent=1 // pred_check
      _
    $region19: #{tpu_custom_call.1} parent=1 // pred_check_branch
      %39 = sbr.rel (0) target = $region21
    $region20: #{tpu_custom_call.1} parent=1 // pred_region
      %40 = dma.done [#allocation6], 256
    $region21: #{tpu_custom_call.1} parent=1 // pred_fallthru
      _
    %v42 = vld [vmem:[#allocation2] sm:$0xff]
    %v43 = vpack.c.bf16 %v42, %v42
    %v44 = vld [vmem:[#allocation5] sm:$0xff]
    %v45 = vld [vmem:[#allocation5 + $0x8] sm:$0xf]
    %v46 = vpack.c.bf16 %v45, %v44
    %v47 = vld [vmem:[%s2] sm:$0x1]
    %v49 = vlaneseq
    %v50 = vshrl.u32 %v49, 7
    %v51 = vsub.s32 0, %v50
    %v52 = vrot.slane %v47, %v51
    %vm54 = vcmask 97280
    %v56 = vsel %vm54, %v43, 0
    %vm58 = vcmask 1045504
    %v60 = vsel %vm58, %v46, 0
    %62 = vmatprep.subr.bf16.mxu0 0
    %63 = vmatpush1.bf16.msra.mxu0 %v60
    %64 = vmatprep.subr.bf16.mxu0 0
    %65 = vmatpush1.bf16.msra.mxu0 0
    %66 = vmatprep.subr.bf16.mxu0 0
    %67 = vmatpush1.bf16.msra.mxu0 0
    %68 = vmatprep.subr.bf16.mxu0 0
    %69 = vmatpush1.bf16.msra.mxu0 0
    %70 = vmatprep.subr.bf16.mxu0 0
    %71 = vmatpush1.bf16.msra.mxu0 0
    %72 = vmatprep.subr.bf16.mxu0 0
    %73 = vmatpush1.bf16.msra.mxu0 0
    %74 = vmatprep.subr.bf16.mxu0 0
    %75 = vmatpush1.bf16.msra.mxu0 0
    %76 = vmatprep.subr.bf16.mxu0 0
    %77 = vmatpush1.bf16.msra.mxu0 0
    %78 = vmatprep.subr.bf16.mxu0 0
    %79 = vmatpush1.bf16.msra.mxu0 0
    %80 = vmatprep.subr.bf16.mxu0 0
    %81 = vmatpush1.bf16.msra.mxu0 0
    %82 = vmatprep.subr.bf16.mxu0 0
    %83 = vmatpush1.bf16.msra.mxu0 0
    %84 = vmatprep.subr.bf16.mxu0 0
    %85 = vmatpush1.bf16.msra.mxu0 0
    %86 = vmatprep.subr.bf16.mxu0 0
    %87 = vmatpush1.bf16.msra.mxu0 0
    %88 = vmatprep.subr.bf16.mxu0 0
    %89 = vmatpush1.bf16.msra.mxu0 0
    %90 = vmatprep.subr.bf16.mxu0 0
    %91 = vmatpush1.bf16.msra.mxu0 0
    %92 = vmatprep.subr.bf16.mxu0 0
    %93 = vmatpush1.bf16.msra.mxu0 0
    %94 = vmatprep.mubr.bf16.mxu0 0
    %95 = vmatmul.mubr.bf16.gmra.mrb[0].mxu0 %v56
    %v96 = vpop.f32.mrb[0].mxu0
    %v97 = vadd.f32 %v52, %v96
    %v98 = vpop.f32.mrb[0].mxu0
    %v99 = vpop.f32.mrb[0].mxu0
    %v100 = vpop.f32.mrb[0].mxu0
    %101 = vdwg.mxu0
    %vm102 = vcmask 261120
    %103 = vst.msk [vmem:[#allocation7] sm:$0xff] %vm102, %v97
    // Predicated region
    $region22: #{tpu_custom_call.1} parent=1 // pred_check
      _
    $region23: #{tpu_custom_call.1} parent=1 // pred_check_branch
      %105 = sbr.rel (0) target = $region25
    $region24: #{tpu_custom_call.1} parent=1 // pred_region
      %s107 = ssub.s32 128, 128
      %108 = vsyncadd [#allocation4], %s107
      %s110 = sshll.u32 [#allocation7], 4
      %s111 = int_to_ptr.vmem [resolvable:$true] %s110
      %113 = dma.vmem_to_hbm [thread:$0]  %s111, 128, %s3, [#allocation4]
    $region25: #{tpu_custom_call.1} parent=1 // pred_fallthru
      _
    // Predicated region
    $region26: #{tpu_custom_call.1} parent=1 // pred_check
      _
    $region27: #{tpu_custom_call.1} parent=1 // pred_check_branch
      %115 = sbr.rel (0) target = $region29
    $region28: #{tpu_custom_call.1} parent=1 // pred_region
      %116 = dma.done [#allocation4], 128
    $region29: #{tpu_custom_call.1} parent=1 // pred_fallthru
      _
    %117 = vsyncpa [#allocation3], 1
    %118 = vsyncpa [#allocation6], 1
    %119 = vsyncpa [#allocation4], 1

</llo_original>
